<compile_context>
chip_gen: v7x
topology: tpu7x:2x2x1
jax: 0.10.0
libtpu: 0.0.40
codegen_flags: <defaults>
</compile_context>

<pallas_src>
from functools import lru_cache
from math import comb

import numpy as np
import jax
import jax.numpy as jnp
from jax.experimental import pallas as pl
from jax.experimental.pallas import tpu as pltpu


_ROW_TILE_CAP = 2048          # max rows per grid step
_VMEM_BUDGET = 8 << 20        # ~8 MiB for the double-buffered in/out tiles


# ----------------------------------------------------------------------------
# Pallas kernel: one lane-dense matmul per row tile.
#   ab_ref : (TM, NA*NB)    flattened term outer products (rows = (dim, p, q))
#   m2_ref : (NA*NB, NCP)   folded Bernstein product weights, lane-padded
#   o_ref  : (TM, NCP)      product coefficients (lane-dense, unmasked store)
# ----------------------------------------------------------------------------
def _bern_matmul_kernel(ab_ref, m2_ref, o_ref):
    o_ref[...] = jnp.dot(ab_ref[...], m2_ref[...],
                         preferred_element_type=jnp.float32)


@lru_cache(maxsize=None)
def _mult_matrix(na, nb, ncp):
    """Folded Bernstein-product weights, shape (na*nb, ncp) (lane-padded)."""
    nc = na + nb - 1
    m = np.zeros((na * nb, ncp), np.float32)
    da, db, dc = na - 1, nb - 1, nc - 1
    for i in range(na):
        for j in range(nb):
            m[i * nb + j, i + j] = comb(da, i) * comb(db, j) / comb(dc, i + j)
    return jnp.asarray(m)


def _pick_row_tile(r8, k, ncp):
    """Largest sublane-aligned row tile fitting the VMEM budget (<= cap)."""
    per_row_bytes = 4 * 2 * (k + ncp)          # double-buffered in + out rows
    tm = (_VMEM_BUDGET // per_row_bytes) // 8 * 8
    tm = max(8, min(tm, _ROW_TILE_CAP, r8))
    return tm


def bern_multiply(a, b):
    """a: (D, TA, NA), b: (D, TB, NB) -> (D, TA*TB, NA+NB-1), float32."""
    a = jnp.asarray(a, jnp.float32)
    b = jnp.asarray(b, jnp.float32)
    d, ta, na = a.shape
    d2, tb, nb = b.shape
    assert d == d2, (d, d2)
    nc = na + nb - 1
    ncp = pl.cdiv(nc, 128) * 128              # lane-dense output width
    k = na * nb

    m2 = _mult_matrix(na, nb, ncp)            # (k, ncp) trace-time constant

    # Term outer product (cheap XLA broadcast-multiply done in the wrapper):
    #   rows = (dim, term_P, term_Q), cols = (i, j) with j minor.
    ab = (a[:, :, None, :, None] * b[:, None, :, None, :]).reshape(d * ta * tb, k)

    r = d * ta * tb
    r8 = ((r + 7) // 8) * 8                   # sublane-pad the row axis
    tm = _pick_row_tile(r8, k, ncp)
    grid_m = pl.cdiv(r8, tm)
    r_pad = grid_m * tm
    if r_pad != r:
        ab = jnp.pad(ab, ((0, r_pad - r), (0, 0)))

    out = pl.pallas_call(
        _bern_matmul_kernel,
        out_shape=jax.ShapeDtypeStruct((r_pad, ncp), jnp.float32),
        grid_spec=pltpu.PrefetchScalarGridSpec(
            num_scalar_prefetch=0,
            grid=(grid_m,),
            in_specs=[
                pl.BlockSpec((tm, k), lambda i: (i, 0)),
                pl.BlockSpec((k, ncp), lambda i: (0, 0)),   # fetched once
            ],
            out_specs=pl.BlockSpec((tm, ncp), lambda i: (i, 0)),
        ),
        compiler_params=pltpu.CompilerParams(
            dimension_semantics=("parallel",)),
    )(ab, m2)

    # Glue (outside the kernel): drop padding, merge the term-pair axes.
    return out[:r, :nc].reshape(d, ta * tb, nc)


class PowerModule:
    """JAX/Pallas port of rep/Bern_NN.py::PowerModule (forward pass)."""

    def __init__(self, dims, degree, power):
        self.dims = dims
        self.degree = degree
        self.power = power

    def __call__(self, inputs):
        if self.power == 0:
            # Matches the original torch.ones(dims * [1]).
            return jnp.ones((1,) * self.dims, dtype=jnp.float32)
        elif self.power == 1:
            return inputs
        else:
            # Linear multiply chain, exactly as in the original module, so the
            # term-axis ordering of the result matches.  (Exponentiation-by-
            # squaring would cut launches to O(log p) but permutes the terms.)
            power_result = inputs
            for _ in range(2, self.power + 1):
                power_result = bern_multiply(power_result, inputs)
            return power_result


# ----------------------------------------------------------------------------
# Pure-numpy reference for validation
# ----------------------------------------------------------------------------
def _bern_multiply_ref(a, b):
    a = np.asarray(a, np.float64)
    b = np.asarray(b, np.float64)
    d, ta, na = a.shape
    _, tb, nb = b.shape
    nc = na + nb - 1
    out = np.zeros((d, ta, tb, nc), np.float64)
    for i in range(na):
        for j in range(nb):
            w = comb(na - 1, i) * comb(nb - 1, j) / comb(nc - 1, i + j)
            out[:, :, :, i + j] += w * a[:, :, None, i] * b[:, None, :, j]
    return out.reshape(d, ta * tb, nc)


def _power_ref(inputs, dims, power):
    if power == 0:
        return np.ones((1,) * dims, np.float64)
    res = np.asarray(inputs, np.float64)
    for _ in range(2, power + 1):
        res = _bern_multiply_ref(res, inputs)
    return res


if __name__ == "__main__":
    key = jax.random.PRNGKey(0)

    # Case 1: small shapes matching the module's typical use.
    dims, n_terms, degree, power = 2, 3, 4, 3
    k1, k2 = jax.random.split(key)
    inputs = jax.random.normal(k1, (dims, n_terms, degree), dtype=jnp.float32)
    out = jax.block_until_ready(PowerModule(dims, degree, power)(inputs))
    ref = _power_ref(np.asarray(inputs), dims, power)
    assert out.shape == ref.shape, (out.shape, ref.shape)
    np.testing.assert_allclose(np.asarray(out), ref, rtol=1e-2, atol=1e-2)

    # Case 2: slightly larger shapes to exercise a multi-step row grid.
    dims, n_terms, degree, power = 3, 8, 6, 3
    inputs2 = jax.random.normal(k2, (dims, n_terms, degree), dtype=jnp.float32)
    out2 = jax.block_until_ready(PowerModule(dims, degree, power)(inputs2))
    ref2 = _power_ref(np.asarray(inputs2), dims, power)
    assert out2.shape == ref2.shape, (out2.shape, ref2.shape)
    np.testing.assert_allclose(np.asarray(out2), ref2, rtol=1e-2, atol=1e-2)

    # power == 0 and power == 1 branches.
    assert PowerModule(2, 4, 0)(inputs).shape == (1, 1)
    assert PowerModule(2, 4, 1)(inputs) is inputs

    print("KERNEL_OK")
</pallas_src>

<mosaic_0001>
module attributes {stable_mosaic.version = 11 : i64} {
  func.func @_bern_matmul_kernel(%arg0: i32, %arg1: memref<24x16xf32, #tpu.memory_space<vmem>>, %arg2: memref<16x128xf32, #tpu.memory_space<vmem>>, %arg3: memref<24x128xf32, #tpu.memory_space<vmem>>) attributes {dimension_semantics = [#tpu.dimension_semantics<parallel>], iteration_bounds = array<i64: 1>, scalar_prefetch = 0 : i64, scratch_operands = 0 : i64, tpu.core_type = #tpu.core_type<tc>, window_params = [{transform_indices = @transform_0, window_bounds = array<i64: 24, 16>}, {pipeline_mode = #tpu.pipeline_mode<synchronous>, transform_indices = @transform_1, window_bounds = array<i64: 16, 128>}, {transform_indices = @transform_2, window_bounds = array<i64: 24, 128>}]} {
    %c0 = arith.constant 0 : index
    %c0_0 = arith.constant 0 : index
    %0 = vector.load %arg1[%c0, %c0_0] : memref<24x16xf32, #tpu.memory_space<vmem>>, vector<24x16xf32>
    %c0_1 = arith.constant 0 : index
    %c0_2 = arith.constant 0 : index
    %1 = vector.load %arg2[%c0_1, %c0_2] : memref<16x128xf32, #tpu.memory_space<vmem>>, vector<16x128xf32>
    %cst = arith.constant dense<0.000000e+00> : vector<24x128xf32>
    %2 = tpu.matmul %0, %1, %cst {dimension_numbers = #tpu.dot_dimension_numbers<[1], [0], [0], [1], [0, 0, 1, 1], [], []>} : vector<24x16xf32>, vector<16x128xf32>, vector<24x128xf32> -> vector<24x128xf32>
    %c0_3 = arith.constant 0 : index
    %c0_4 = arith.constant 0 : index
    %3 = vector.load %arg3[%c0_3, %c0_4] : memref<24x128xf32, #tpu.memory_space<vmem>>, vector<24x128xf32>
    tpu.vector_store %arg3[%c0_3, %c0_4], %2 {strides = array<i32>} : memref<24x128xf32, #tpu.memory_space<vmem>>, vector<24x128xf32>,
    return
  }
  func.func @transform_0(%arg0: i32) -> (i32, i32) {
    %c0_i32 = arith.constant 0 : i32
    %c0_i32_0 = arith.constant 0 : i32
    return %arg0, %c0_i32 : i32, i32
  }
  func.func @transform_1(%arg0: i32) -> (i32, i32) {
    %c0_i32 = arith.constant 0 : i32
    %c0_i32_0 = arith.constant 0 : i32
    %c0_i32_1 = arith.constant 0 : i32
    return %c0_i32, %c0_i32_0 : i32, i32
  }
  func.func @transform_2(%arg0: i32) -> (i32, i32) {
    %c0_i32 = arith.constant 0 : i32
    %c0_i32_0 = arith.constant 0 : i32
    return %arg0, %c0_i32 : i32, i32
  }
}

</mosaic_0001>

<llo_original>
// kernel: tpu_custom_call.1
$region0: #{tpu_custom_call.1}
  #allocation0 [shape = 'u32[]', space=smem, size = 0x4, offset = 0x4, fixed_abs, tag = 'smem constant byte address 0x4 - core index']
  #allocation1 [shape = 'u32[144,128]{1,0:T(1,128)}', space=vmem, size = 0x12000, scoped, tag = 'internal scratch']
  %s0 = inlined_call_operand.vmem [shape: f32[24,16], index: 0, kind: input, shape index: {}]
  %s1 = inlined_call_operand.vmem [shape: f32[16,128], index: 1, kind: input, shape index: {}]
  %s2 = inlined_call_operand.hbm [shape: f32[24,128], index: 2, kind: output, shape index: {}]
  %s3 = sld [smem:[#allocation0]]
  $region18: #{tpu_custom_call.1} parent=0
    _
  %s5 = ssub.s32 1, %s3
  %s6 = scalar_select 0, %s5, %s3
  $region1: #{tpu_custom_call.1} parent=0
    #allocation2 [shape = 'u8[12288]{0}', space=vmem, size = 0x3000, scoped, tag = 'output window, operand 0, single buffered']
    #allocation3 [shape = 's32[1]{0}', space=sflag, size = 0x4, scoped, tag = 'scoped memory for tpu_custom_call.1']
    %7 = vsyncpa [#allocation3], 0
    // Predicated region
    $region2: #{tpu_custom_call.1} parent=1 // pred_check
      _
    $region3: #{tpu_custom_call.1} parent=1 // pred_check_branch
      %9 = sbr.rel (0) target = $region5
    $region4: #{tpu_custom_call.1} parent=1 // pred_region
      _
    $region5: #{tpu_custom_call.1} parent=1 // pred_fallthru
      _
    // Predicated region
    $region6: #{tpu_custom_call.1} parent=1 // pred_check
      _
    $region7: #{tpu_custom_call.1} parent=1 // pred_check_branch
      %11 = sbr.rel (0) target = $region9
    $region8: #{tpu_custom_call.1} parent=1 // pred_region
      _
    $region9: #{tpu_custom_call.1} parent=1 // pred_fallthru
      _
    %v12 = vld [vmem:[%s0] sm:$0xff]
    %v13 = vld [vmem:[%s0 + $0x8] sm:$0xff]
    %v14 = vld [vmem:[%s0 + $0x10] sm:$0xff]
    %v15 = vld [vmem:[%s1] sm:$0xff]
    %v16 = vld [vmem:[%s1 + $0x8] sm:$0xff]
    %vm17 = vcmask 130048
    %v19 = vsel %vm17, %v12, 0
    %v22 = vsel %vm17, %v13, 0
    %v25 = vsel %vm17, %v14, 0
    %27 = vmatprep.subr.mxu0 0.0
    %28 = vmatpush1.msra.mxu0 %v15
    %29 = vmatprep.subr.mxu0 0.0
    %30 = vmatpush1.msra.mxu0 %v16
    %31 = vmatprep.subr.mxu0 0.0
    %32 = vmatpush1.msra.mxu0 0.0
    %33 = vmatprep.subr.mxu0 0.0
    %34 = vmatpush1.msra.mxu0 0.0
    %35 = vmatprep.subr.mxu0 0.0
    %36 = vmatpush1.msra.mxu0 0.0
    %37 = vmatprep.subr.mxu0 0.0
    %38 = vmatpush1.msra.mxu0 0.0
    %39 = vmatprep.subr.mxu0 0.0
    %40 = vmatpush1.msra.mxu0 0.0
    %41 = vmatprep.subr.mxu0 0.0
    %42 = vmatpush1.msra.mxu0 0.0
    %43 = vmatprep.subr.mxu0 0.0
    %44 = vmatpush1.msra.mxu0 0.0
    %45 = vmatprep.subr.mxu0 0.0
    %46 = vmatpush1.msra.mxu0 0.0
    %47 = vmatprep.subr.mxu0 0.0
    %48 = vmatpush1.msra.mxu0 0.0
    %49 = vmatprep.subr.mxu0 0.0
    %50 = vmatpush1.msra.mxu0 0.0
    %51 = vmatprep.subr.mxu0 0.0
    %52 = vmatpush1.msra.mxu0 0.0
    %53 = vmatprep.subr.mxu0 0.0
    %54 = vmatpush1.msra.mxu0 0.0
    %55 = vmatprep.subr.mxu0 0.0
    %56 = vmatpush1.msra.mxu0 0.0
    %57 = vmatprep.subr.mxu0 0.0
    %58 = vmatpush1.msra.mxu0 0.0
    %59 = vmatprep.subr.mxu0 0.0
    %60 = vmatpush1.msra.mxu0 0.0
    %61 = vmatprep.subr.mxu0 0.0
    %62 = vmatpush1.msra.mxu0 0.0
    %63 = vmatprep.subr.mxu0 0.0
    %64 = vmatpush1.msra.mxu0 0.0
    %65 = vmatprep.subr.mxu0 0.0
    %66 = vmatpush1.msra.mxu0 0.0
    %67 = vmatprep.subr.mxu0 0.0
    %68 = vmatpush1.msra.mxu0 0.0
    %69 = vmatprep.subr.mxu0 0.0
    %70 = vmatpush1.msra.mxu0 0.0
    %71 = vmatprep.subr.mxu0 0.0
    %72 = vmatpush1.msra.mxu0 0.0
    %73 = vmatprep.subr.mxu0 0.0
    %74 = vmatpush1.msra.mxu0 0.0
    %75 = vmatprep.subr.mxu0 0.0
    %76 = vmatpush1.msra.mxu0 0.0
    %77 = vmatprep.subr.mxu0 0.0
    %78 = vmatpush1.msra.mxu0 0.0
    %79 = vmatprep.subr.mxu0 0.0
    %80 = vmatpush1.msra.mxu0 0.0
    %81 = vmatprep.subr.mxu0 0.0
    %82 = vmatpush1.msra.mxu0 0.0
    %83 = vmatprep.subr.mxu0 0.0
    %84 = vmatpush1.msra.mxu0 0.0
    %85 = vmatprep.subr.mxu0 0.0
    %86 = vmatpush1.msra.mxu0 0.0
    %87 = vmatprep.subr.mxu0 0.0
    %88 = vmatpush1.msra.mxu0 0.0
    %89 = vmatprep.subr.mxu0 0.0
    %90 = vmatpush1.msra.mxu0 0.0
    %91 = vmatprep.mubr.f32.mxu0 0.0
    %92 = vmatmul.mubr.f32.gmra.mrb[0].mxu0 %v19
    %v93 = vpop.f32.mrb[0].mxu0
    %v94 = vadd.f32 0.0, %v93
    %v95 = vpop.f32.mrb[0].mxu0
    %96 = vmatprep.mubr.f32.mxu0 0.0
    %97 = vmatmul.mubr.f32.gmra.mrb[0].mxu0 %v22
    %v98 = vpop.f32.mrb[0].mxu0
    %v99 = vadd.f32 0.0, %v98
    %v100 = vpop.f32.mrb[0].mxu0
    %101 = vmatprep.mubr.f32.mxu0 0.0
    %102 = vmatmul.mubr.f32.gmra.mrb[0].mxu0 %v25
    %v103 = vpop.f32.mrb[0].mxu0
    %v104 = vadd.f32 0.0, %v103
    %v105 = vpop.f32.mrb[0].mxu0
    %106 = vdwg.mxu0
    %107 = vst [vmem:[#allocation2] sm:$0xff] %v94
    %108 = vst [vmem:[#allocation2 + $0x8] sm:$0xff] %v99
    %109 = vst [vmem:[#allocation2 + $0x10] sm:$0xff] %v104
    // Predicated region
    $region10: #{tpu_custom_call.1} parent=1 // pred_check
      _
    $region11: #{tpu_custom_call.1} parent=1 // pred_check_branch
      %111 = sbr.rel (0) target = $region13
    $region12: #{tpu_custom_call.1} parent=1 // pred_region
      %s113 = ssub.s32 384, 384
      %114 = vsyncadd [#allocation3], %s113
      %s115 = sshll.u32 [#allocation2], 4
      %s116 = int_to_ptr.vmem [resolvable:$true] %s115
      %121 = dma.vmem_to_hbm [thread:$0]  %s116, 384, %s2, [#allocation3], 128, 128, 8
    $region13: #{tpu_custom_call.1} parent=1 // pred_fallthru
      _
    // Predicated region
    $region14: #{tpu_custom_call.1} parent=1 // pred_check
      _
    $region15: #{tpu_custom_call.1} parent=1 // pred_check_branch
      %123 = sbr.rel (0) target = $region17
    $region16: #{tpu_custom_call.1} parent=1 // pred_region
      %124 = dma.done [#allocation3], 384
    $region17: #{tpu_custom_call.1} parent=1 // pred_fallthru
      _
    %125 = vsyncpa [#allocation3], 1

</llo_original>
